<compile_context>
chip_gen: v5e
topology: v5e:2x2
jax: 0.10.0
libtpu: 0.0.40
codegen_flags: <defaults>
</compile_context>

<pallas_src>
import functools

import numpy as np
import jax
import jax.numpy as jnp
from jax.experimental import pallas as pl
from jax.experimental.pallas import tpu as pltpu


def _masker_kernel(w_ref, b_ref, pool_ref, up_ref, dmat_ref, x_ref,
                   mask_ref, dil_ref, *, TB, G, do_pool, do_up):
    """Fused eval-mode Masker forward for TB batch items (lane-flat spatial).

    w_ref    : VMEM (G, C)         x.dtype -- w[:G]-w[G:]              (resident constant)
    b_ref    : VMEM (G, 1)         f32     -- b[:G]-b[G:]              (resident constant)
    pool_ref : VMEM (H*W, hm*wm)   f32     -- adaptive-avg-pool matrix (resident constant)
    up_ref   : VMEM (hm*wm, oh*ow) f32     -- nearest-resize 0/1 matrix(resident constant)
    dmat_ref : VMEM (oh*ow, oh*ow) f32     -- 3x3 zero-pad box 0/1     (resident constant)
    x_ref    : VMEM (TB, C, H*W)   x.dtype -- streamed per grid step
    mask_ref : VMEM (TB, G, oh*ow) f32     -- post-interp hard mask (lane-dense)
    dil_ref  : VMEM (TB, 1, oh*ow) f32     -- dilated plane (all G groups identical)
    """
    f32 = jnp.float32
    w = w_ref[...]
    bcol = b_ref[...]
    pmat = pool_ref[...] if do_pool else None
    umat = up_ref[...] if do_up else None
    dmat = dmat_ref[...]

    for b in range(TB):                       # TB is small & static (<= 8): unrolled
        xb = x_ref[b]                                               # (C, H*W), native dtype
        # 1x1-conv "difference" logits on the MXU (conv and avg-pool commute,
        # so the big K=C reduction happens once at full resolution and the
        # pooling acts on the tiny (G, H*W) result).
        lg = jnp.dot(w, xb, preferred_element_type=f32)             # (G, H*W)  f32 acc
        pooled = (jnp.dot(lg, pmat, preferred_element_type=f32)
                  if do_pool else lg)                               # (G, hm*wm)
        # eval-mode hard mask: logits[:, :G] >= logits[:, G:]  <=>  diff >= 0
        msk = (pooled + bcol >= 0.0).astype(f32)                    # (G, hm*wm)
        up = (jnp.dot(msk, umat, preferred_element_type=f32)
              if do_up else msk)                                    # (G, oh*ow)
        mask_ref[b, :, :] = up
        # ExpandMask (stride=1): all-ones (G, G, 3, 3) conv == zero-padded 3x3
        # box sum of the group-summed mask; every output group is identical,
        # so only one plane is computed/stored.
        ssum = up if G == 1 else jnp.sum(up, axis=0, keepdims=True) # (1, oh*ow)
        box = jnp.dot(ssum, dmat, preferred_element_type=f32)       # (1, oh*ow)
        dil_ref[b, :, :] = (box > 0.5).astype(f32)


# ---- host-built linear spatial operators (tiny, data-independent) ------------
def _adaptive_avg_pool_matrix(n_in, n_out):
    """(n_in, n_out) matrix M with pooled = x @ M (PyTorch adaptive_avg_pool windows)."""
    m = np.zeros((n_in, n_out), np.float32)
    for o in range(n_out):
        s = (o * n_in) // n_out
        e = -((-(o + 1) * n_in) // n_out)            # ceil((o+1)*n_in/n_out)
        m[s:e, o] = 1.0 / float(e - s)
    return m


def _nearest_resize_matrix(n_in, n_out):
    """(n_in, n_out) 0/1 matrix: out[o] = in[floor(o*n_in/n_out)] (F.interpolate 'nearest')."""
    m = np.zeros((n_in, n_out), np.float32)
    src = (np.arange(n_out) * n_in) // n_out
    m[src, np.arange(n_out)] = 1.0
    return m


def _band_matrix(n, pad):
    idx = np.arange(n)
    return (np.abs(idx[:, None] - idx[None, :]) <= pad).astype(np.float32)


class Masker:
    def __init__(self, in_channels, mask_channel_group, mask_size,
                 feature_size=32, dilate_stride=1, key=None):
        self.in_channels = in_channels
        self.g = mask_channel_group
        self.mask_size = mask_size
        self.feature_size = feature_size
        self.dilate_stride = dilate_stride
        self.padding = 1                              # ExpandMask default
        out_ch = 2 * mask_channel_group
        if key is None:
            key = jax.random.PRNGKey(0)
        kw_, kb = jax.random.split(key)
        # conv1x1 weight (out, in, 1, 1) stored as (out, in); deterministic init
        self.weight = jax.random.normal(kw_, (out_ch, in_channels), jnp.float32) \
            * (1.0 / float(np.sqrt(in_channels)))
        bias = jax.random.normal(kb, (out_ch,), jnp.float32) * 0.1
        bias = bias.at[:mask_channel_group].set(5.0)
        bias = bias.at[mask_channel_group + 1:].set(1.0)   # index G untouched, as in reference
        self.bias = bias
        self.conv2_flops_pp = out_ch * in_channels + in_channels

    def __call__(self, x, temperature):
        del temperature   # TODO(synk): training-mode F.gumbel_softmax path (RNG) not implemented.
        B, C, H, W = x.shape
        G = self.g
        HW = H * W

        if self.mask_size < H:                       # adaptive_avg_pool2d(x, mask_size)
            hm, wm = self.mask_size, self.mask_size
        else:
            hm, wm = H, W
        do_pool = (hm, wm) != (H, W)
        if hm < self.feature_size:                   # F.interpolate(..., 'nearest')
            oh, ow = self.feature_size, self.feature_size
        else:
            oh, ow = hm, wm
        do_up = (oh, ow) != (hm, wm)
        O = oh * ow

        # TODO(synk): ExpandMask stride>1 (conv_transpose2d pad-kernel) path not implemented.
        assert self.dilate_stride == 1

        dt = x.dtype
        itemsize = dt.itemsize
        # tiny parameter algebra only (never a pass over x):
        # logits[:, :G]-logits[:, G:] == (w[:G]-w[G:]) @ x  + (b[:G]-b[G:])
        w_diff = (self.weight[:G] - self.weight[G:]).astype(dt)             # (G, C), MXU dtype
        b_col = (self.bias[:G] - self.bias[G:]).reshape(G, 1).astype(jnp.float32)

        pool_m = (jnp.asarray(np.kron(_adaptive_avg_pool_matrix(H, hm),
                                      _adaptive_avg_pool_matrix(W, wm)))
                  if do_pool else jnp.zeros((1, 1), jnp.float32))
        up_m = (jnp.asarray(np.kron(_nearest_resize_matrix(hm, oh),
                                    _nearest_resize_matrix(wm, ow)))
                if do_up else jnp.zeros((1, 1), jnp.float32))
        # TODO(synk): for very large feature_size the (O, O) kron box matrix should be replaced
        # by a roll/mask-based 3x3 box sum to bound VMEM; fine for feature_size <= ~32.
        dil_m = jnp.asarray(np.kron(_band_matrix(oh, self.padding),
                                    _band_matrix(ow, self.padding)))

        x_flat = x.reshape(B, C, HW)     # free view of contiguous NCHW -> lane-dense blocks

        # ---- batch blocking + real VMEM accounting (per-generation cap) ----
        try:
            phys = int(getattr(pltpu.get_tpu_info(), "vmem_capacity_bytes", 64 << 20))
        except Exception:
            phys = 64 << 20                               # conservative (v7x-sized) default
        cap = (phys * 3) // 4                             # ~48 MiB on v7x, ~96 MiB on v5e/v6e
        headroom = 8 << 20
        per_item = C * HW * itemsize + (G + 1) * O * 4    # x block + both output blocks
        const_bytes = int(w_diff.size) * itemsize + G * 4 \
            + (int(pool_m.size) + int(up_m.size) + int(dil_m.size)) * 4
        avail = max(cap - 2 * const_bytes - headroom, 2 * per_item)
        tb_cap = min(B, 8,
                     max(1, avail // (2 * per_item)),     # double-buffered blocks fit VMEM
                     max(1, (8 << 20) // per_item))       # keep DMA blocks ~<= 8 MiB
        if B >= 2:
            tb_cap = min(tb_cap, max(1, B // 2))          # >= 2 grid steps (v7x has 2 TCs)
        TB = max(d for d in range(1, int(tb_cap) + 1) if B % d == 0)
        grid_b = B // TB
        need = 2 * (TB * per_item + const_bytes) + headroom
        # TODO(synk): if a single-item x block still exceeds the cap (huge C*H*W), add a C grid
        # axis marked "arbitrary" with accumulation instead of one block.
        vmem_limit = int(min(max(need, 16 << 20), cap))

        kernel = functools.partial(_masker_kernel, TB=TB, G=G,
                                   do_pool=do_pool, do_up=do_up)
        mask_f, dil_f = pl.pallas_call(
            kernel,
            grid=(grid_b,),
            in_specs=[
                pl.BlockSpec((G, C), lambda i: (0, 0)),               # w_diff   (resident)
                pl.BlockSpec((G, 1), lambda i: (0, 0)),               # b_diff   (resident)
                pl.BlockSpec(tuple(pool_m.shape), lambda i: (0, 0)),  # pool matrix
                pl.BlockSpec(tuple(up_m.shape), lambda i: (0, 0)),    # nearest matrix
                pl.BlockSpec(tuple(dil_m.shape), lambda i: (0, 0)),   # 3x3 box matrix
                pl.BlockSpec((TB, C, HW), lambda i: (i, 0, 0)),       # x (native dtype)
            ],
            out_specs=[
                pl.BlockSpec((TB, G, O), lambda i: (i, 0, 0)),        # mask, lane-dense
                pl.BlockSpec((TB, 1, O), lambda i: (i, 0, 0)),        # dilated plane
            ],
            out_shape=[
                jax.ShapeDtypeStruct((B, G, O), jnp.float32),
                jax.ShapeDtypeStruct((B, 1, O), jnp.float32),
            ],
            compiler_params=pltpu.CompilerParams(
                dimension_semantics=("parallel",),
                vmem_limit_bytes=vmem_limit),
        )(w_diff, b_col, pool_m, up_m, dil_m, x_flat)

        mask4 = mask_f.reshape(B, G, oh, ow)
        dil4 = dil_f.reshape(B, 1, oh, ow)
        mask_dil = jnp.broadcast_to(dil4, (B, G, oh, ow)) > 0.5
        sparsity_dil = jnp.mean(dil_f)                    # all G dilated groups are identical
        if oh % hm == 0 and ow % wm == 0:
            # integer nearest-replication factor: mean is preserved exactly by the upsample
            sparsity = jnp.mean(mask_f)
        else:
            # recover the pre-interp mask by inverse nearest indexing (tiny host-side gather)
            idx_h = np.searchsorted((np.arange(oh) * hm) // oh, np.arange(hm))
            idx_w = np.searchsorted((np.arange(ow) * wm) // ow, np.arange(wm))
            sparsity = jnp.mean(mask4[:, :, idx_h, :][:, :, :, idx_w])
        flops = C * hm * wm + self.conv2_flops_pp * hm * wm   # Python int, as in reference
        return mask4, mask_dil, sparsity, sparsity_dil, flops


if __name__ == "__main__":
    key = jax.random.PRNGKey(0)
    kx, kp = jax.random.split(key)
    x = jax.random.normal(kx, (2, 4, 16, 16), jnp.float32)    # NCHW, like PyTorch

    masker = Masker(in_channels=4, mask_channel_group=1, mask_size=8,
                    feature_size=16, dilate_stride=1, key=kp)
    mask, mask_dil, sparsity, sparsity_dil, flops = masker(x, temperature=1.0)
    jax.block_until_ready((mask, mask_dil, sparsity, sparsity_dil))

    assert mask.shape == (2, 1, 16, 16) and mask.dtype == jnp.float32
    assert mask_dil.shape == (2, 1, 16, 16) and mask_dil.dtype == jnp.bool_
    assert isinstance(flops, int)
    print("KERNEL_OK")
</pallas_src>

<mosaic_0001>
module attributes {stable_mosaic.version = 11 : i64} {
  func.func @_masker_kernel(%arg0: i32, %arg1: memref<1x4xf32, #tpu.memory_space<vmem>>, %arg2: memref<1x1xf32, #tpu.memory_space<vmem>>, %arg3: memref<256x64xf32, #tpu.memory_space<vmem>>, %arg4: memref<64x256xf32, #tpu.memory_space<vmem>>, %arg5: memref<256x256xf32, #tpu.memory_space<vmem>>, %arg6: memref<1x4x256xf32, #tpu.memory_space<vmem>>, %arg7: memref<1x1x256xf32, #tpu.memory_space<vmem>>, %arg8: memref<1x1x256xf32, #tpu.memory_space<vmem>>) attributes {dimension_semantics = [#tpu.dimension_semantics<parallel>], iteration_bounds = array<i64: 2>, scalar_prefetch = 0 : i64, scratch_operands = 0 : i64, tpu.core_type = #tpu.core_type<tc>, window_params = [{pipeline_mode = #tpu.pipeline_mode<synchronous>, transform_indices = @transform_0, window_bounds = array<i64: 1, 4>}, {pipeline_mode = #tpu.pipeline_mode<synchronous>, transform_indices = @transform_1, window_bounds = array<i64: 1, 1>}, {pipeline_mode = #tpu.pipeline_mode<synchronous>, transform_indices = @transform_2, window_bounds = array<i64: 256, 64>}, {pipeline_mode = #tpu.pipeline_mode<synchronous>, transform_indices = @transform_3, window_bounds = array<i64: 64, 256>}, {pipeline_mode = #tpu.pipeline_mode<synchronous>, transform_indices = @transform_4, window_bounds = array<i64: 256, 256>}, {transform_indices = @transform_5, window_bounds = array<i64: 1, 4, 256>}, {transform_indices = @transform_6, window_bounds = array<i64: 1, 1, 256>}, {transform_indices = @transform_7, window_bounds = array<i64: 1, 1, 256>}]} {
    %c0 = arith.constant 0 : index
    %c0_0 = arith.constant 0 : index
    %0 = vector.load %arg1[%c0, %c0_0] : memref<1x4xf32, #tpu.memory_space<vmem>>, vector<1x4xf32>
    %c0_1 = arith.constant 0 : index
    %c0_2 = arith.constant 0 : index
    %1 = vector.load %arg2[%c0_1, %c0_2] : memref<1x1xf32, #tpu.memory_space<vmem>>, vector<1x1xf32>
    %c0_3 = arith.constant 0 : index
    %c0_4 = arith.constant 0 : index
    %2 = vector.load %arg3[%c0_3, %c0_4] : memref<256x64xf32, #tpu.memory_space<vmem>>, vector<256x64xf32>
    %c0_5 = arith.constant 0 : index
    %c0_6 = arith.constant 0 : index
    %3 = vector.load %arg4[%c0_5, %c0_6] : memref<64x256xf32, #tpu.memory_space<vmem>>, vector<64x256xf32>
    %c0_7 = arith.constant 0 : index
    %c0_8 = arith.constant 0 : index
    %4 = vector.load %arg5[%c0_7, %c0_8] : memref<256x256xf32, #tpu.memory_space<vmem>>, vector<256x256xf32>
    %c0_9 = arith.constant 0 : index
    %c0_10 = arith.constant 0 : index
    %c0_11 = arith.constant 0 : index
    %5 = vector.load %arg6[%c0_9, %c0_10, %c0_11] : memref<1x4x256xf32, #tpu.memory_space<vmem>>, vector<1x4x256xf32>
    %6 = vector.shape_cast %5 : vector<1x4x256xf32> to vector<4x256xf32>
    %cst = arith.constant dense<0.000000e+00> : vector<1x256xf32>
    %7 = tpu.matmul %0, %6, %cst {dimension_numbers = #tpu.dot_dimension_numbers<[1], [0], [0], [1], [0, 0, 1, 1], [], []>} : vector<1x4xf32>, vector<4x256xf32>, vector<1x256xf32> -> vector<1x256xf32>
    %cst_12 = arith.constant dense<0.000000e+00> : vector<1x64xf32>
    %8 = tpu.matmul %7, %2, %cst_12 {dimension_numbers = #tpu.dot_dimension_numbers<[1], [0], [0], [1], [0, 0, 1, 1], [], []>} : vector<1x256xf32>, vector<256x64xf32>, vector<1x64xf32> -> vector<1x64xf32>
    %9 = vector.broadcast %1 : vector<1x1xf32> to vector<1x64xf32>
    %10 = arith.addf %8, %9 : vector<1x64xf32>
    %cst_13 = arith.constant 0.000000e+00 : f32
    %11 = vector.broadcast %cst_13 : f32 to vector<1x64xf32>
    %12 = arith.cmpf oge, %10, %11 : vector<1x64xf32>
    %13 = arith.extui %12 : vector<1x64xi1> to vector<1x64xi32>
    %14 = arith.sitofp %13 : vector<1x64xi32> to vector<1x64xf32>
    %cst_14 = arith.constant dense<0.000000e+00> : vector<1x256xf32>
    %15 = tpu.matmul %14, %3, %cst_14 {dimension_numbers = #tpu.dot_dimension_numbers<[1], [0], [0], [1], [0, 0, 1, 1], [], []>} : vector<1x64xf32>, vector<64x256xf32>, vector<1x256xf32> -> vector<1x256xf32>
    %c0_15 = arith.constant 0 : index
    %c0_16 = arith.constant 0 : index
    %c0_17 = arith.constant 0 : index
    %16 = vector.load %arg7[%c0_15, %c0_16, %c0_17] : memref<1x1x256xf32, #tpu.memory_space<vmem>>, vector<1x1x256xf32>
    %17 = vector.shape_cast %16 : vector<1x1x256xf32> to vector<1x256xf32>
    %18 = vector.shape_cast %15 : vector<1x256xf32> to vector<1x1x256xf32>
    tpu.vector_store %arg7[%c0_15, %c0_16, %c0_17], %18 {strides = array<i32>} : memref<1x1x256xf32, #tpu.memory_space<vmem>>, vector<1x1x256xf32>,
    %cst_18 = arith.constant dense<0.000000e+00> : vector<1x256xf32>
    %19 = tpu.matmul %15, %4, %cst_18 {dimension_numbers = #tpu.dot_dimension_numbers<[1], [0], [0], [1], [0, 0, 1, 1], [], []>} : vector<1x256xf32>, vector<256x256xf32>, vector<1x256xf32> -> vector<1x256xf32>
    %cst_19 = arith.constant 5.000000e-01 : f32
    %20 = vector.broadcast %cst_19 : f32 to vector<1x256xf32>
    %21 = arith.cmpf ogt, %19, %20 : vector<1x256xf32>
    %22 = arith.extui %21 : vector<1x256xi1> to vector<1x256xi32>
    %23 = arith.sitofp %22 : vector<1x256xi32> to vector<1x256xf32>
    %c0_20 = arith.constant 0 : index
    %c0_21 = arith.constant 0 : index
    %c0_22 = arith.constant 0 : index
    %24 = vector.load %arg8[%c0_20, %c0_21, %c0_22] : memref<1x1x256xf32, #tpu.memory_space<vmem>>, vector<1x1x256xf32>
    %25 = vector.shape_cast %24 : vector<1x1x256xf32> to vector<1x256xf32>
    %26 = vector.shape_cast %23 : vector<1x256xf32> to vector<1x1x256xf32>
    tpu.vector_store %arg8[%c0_20, %c0_21, %c0_22], %26 {strides = array<i32>} : memref<1x1x256xf32, #tpu.memory_space<vmem>>, vector<1x1x256xf32>,
    return
  }
  func.func @transform_0(%arg0: i32) -> (i32, i32) {
    %c0_i32 = arith.constant 0 : i32
    %c0_i32_0 = arith.constant 0 : i32
    %c0_i32_1 = arith.constant 0 : i32
    return %c0_i32, %c0_i32_0 : i32, i32
  }
  func.func @transform_1(%arg0: i32) -> (i32, i32) {
    %c0_i32 = arith.constant 0 : i32
    %c0_i32_0 = arith.constant 0 : i32
    %c0_i32_1 = arith.constant 0 : i32
    return %c0_i32, %c0_i32_0 : i32, i32
  }
  func.func @transform_2(%arg0: i32) -> (i32, i32) {
    %c0_i32 = arith.constant 0 : i32
    %c0_i32_0 = arith.constant 0 : i32
    %c0_i32_1 = arith.constant 0 : i32
    return %c0_i32, %c0_i32_0 : i32, i32
  }
  func.func @transform_3(%arg0: i32) -> (i32, i32) {
    %c0_i32 = arith.constant 0 : i32
    %c0_i32_0 = arith.constant 0 : i32
    %c0_i32_1 = arith.constant 0 : i32
    return %c0_i32, %c0_i32_0 : i32, i32
  }
  func.func @transform_4(%arg0: i32) -> (i32, i32) {
    %c0_i32 = arith.constant 0 : i32
    %c0_i32_0 = arith.constant 0 : i32
    %c0_i32_1 = arith.constant 0 : i32
    return %c0_i32, %c0_i32_0 : i32, i32
  }
  func.func @transform_5(%arg0: i32) -> (i32, i32, i32) {
    %c0_i32 = arith.constant 0 : i32
    %c0_i32_0 = arith.constant 0 : i32
    %c0_i32_1 = arith.constant 0 : i32
    return %arg0, %c0_i32, %c0_i32_0 : i32, i32, i32
  }
  func.func @transform_6(%arg0: i32) -> (i32, i32, i32) {
    %c0_i32 = arith.constant 0 : i32
    %c0_i32_0 = arith.constant 0 : i32
    %c0_i32_1 = arith.constant 0 : i32
    return %arg0, %c0_i32, %c0_i32_0 : i32, i32, i32
  }
  func.func @transform_7(%arg0: i32) -> (i32, i32, i32) {
    %c0_i32 = arith.constant 0 : i32
    %c0_i32_0 = arith.constant 0 : i32
    %c0_i32_1 = arith.constant 0 : i32
    return %arg0, %c0_i32, %c0_i32_0 : i32, i32, i32
  }
}

</mosaic_0001>

<llo_original>
// kernel: tpu_custom_call.1
$region0: #{tpu_custom_call.1}
  #allocation0 [shape = 'u32[]', space=smem, size = 0x4, offset = 0x4, fixed_abs, tag = 'smem constant byte address 0x4 - core index']
  #allocation1 [shape = 'u32[72,128]{1,0:T(1,128)}', space=vmem, size = 0x9000, scoped, tag = 'internal scratch']
  #allocation2 [shape = 'f32[1,1]{1,0:T(1,128)S(1)}', space=vmem, size = 0x200, scoped, tag = 'scoped memory for tpu_custom_call.1']
  %s0 = inlined_call_operand.vmem [shape: f32[1,4], index: 0, kind: input, shape index: {}]
  %s1 = inlined_call_operand.<no memory space> [shape: f32[1,1], index: 1, kind: input, shape index: {}]
  %s2 = inlined_call_operand.vmem [shape: f32[256,64], index: 2, kind: input, shape index: {}]
  %s3 = inlined_call_operand.vmem [shape: f32[64,256], index: 3, kind: input, shape index: {}]
  %s4 = inlined_call_operand.hbm [shape: f32[256,256], index: 4, kind: input, shape index: {}]
  %s5 = inlined_call_operand.vmem [shape: f32[2,4,256], index: 5, kind: input, shape index: {}]
  %s6 = inlined_call_operand.hbm [shape: f32[2,1,256], index: 6, kind: output, shape index: {0}]
  %s7 = inlined_call_operand.hbm [shape: f32[2,1,256], index: 7, kind: output, shape index: {1}]
  %8 = xla_tuple %s6, %s7
  %s9 = sld [smem:[#allocation0]]
  $region69: #{tpu_custom_call.1} parent=0
    _
  %s11 = ssub.s32 1, %s9
  %s12 = scalar_select 0, %s11, %s9
  %v13 = vstv %s1
  %14 = vst [vmem:[#allocation2] sm:$0x1] %v13
  $region1: #{tpu_custom_call.1} parent=0
    #allocation3 [shape = 'u8[262144]{0}', space=vmem, size = 0x40000, scoped, tag = 'input window, operand 4, single buffered']
    #allocation4 [shape = 's32[2]{0}', space=sflag, size = 0x8, scoped, tag = 'scoped memory for tpu_custom_call.1']
    #allocation5 [shape = 's32[2]{0}', space=sflag, size = 0x8, scoped, tag = 'scoped memory for tpu_custom_call.1']
    #allocation6 [shape = 'u8[2048]{0}', space=vmem, size = 0x800, scoped, tag = 'output window, operand 0']
    #allocation7 [shape = 'u8[2048]{0}', space=vmem, size = 0x800, scoped, tag = 'output window, operand 1']
    #allocation8 [shape = 's32[2]{0}', space=sflag, size = 0x8, scoped, tag = 'scoped memory for tpu_custom_call.1']
    %15 = vsyncpa [#allocation4], 0
    %16 = vsyncpa [#allocation5], 0
    %s17 = scalar_lea.sflag [#allocation5], 1
    %18 = vsyncpa %s17, 0
    %19 = vsyncpa [#allocation8], 0
    %s20 = scalar_lea.sflag [#allocation8], 1
    %21 = vsyncpa %s20, 0
    loop: start=0, step=1, limit=4
    $region2: #{tpu_custom_call.1} parent=1 // loop_pre_header
      _
    $region3: #{tpu_custom_call.1} parent=1 // loop_header
      %s23 = sphi 0, %s27
      %p24 = scmp.ge.s32.totalorder %s23, 4
      %s31 = sphi 0, %s31
      %s33 = sphi 0, %s31
      %s34 = sphi 0, %s33
      %s48 = sphi 0, %s34
      %s52 = sphi 0, %s52
      %s54 = sphi 0, %s52
      %s55 = sphi 0, %s54
      %s69 = sphi 0, %s55
      %s73 = sphi 0, %s73
      %s75 = sphi 0, %s73
      %s76 = sphi 0, %s75
      %s90 = sphi 0, %s76
      %s94 = sphi 0, %s94
      %s96 = sphi 0, %s94
      %s97 = sphi 0, %s96
      %s111 = sphi 0, %s97
      %s115 = sphi 0, %s115
      %s117 = sphi 0, %s115
      %s118 = sphi 0, %s117
      %s132 = sphi 0, %s118
      %s138 = sphi 0, %s140
      %s141 = sphi 0, %s138
      %s142 = sphi 0, %s141
      %s158 = sphi 0, %s142
      %s164 = sphi 0, %s166
      %s167 = sphi 0, %s164
      %s168 = sphi 0, %s167
      %s184 = sphi 0, %s168
      %s190 = sphi 0, %s192
      %s193 = sphi 0, %s190
      %s194 = sphi 0, %s193
      %s210 = sphi 0, %s194
    $region4: #{tpu_custom_call.1} parent=1 // loop_header_branch
      %26 = sbr.rel (%p24) target = $region8
    $region5: #{tpu_custom_call.1} parent=1 // loop_body
      %s28 = ssub.s32 %s23, 1
      %s29 = ssub.s32 %s23, 2
      %s30 = sadd.s32 %s23, 1
      %s32 = sadd.s32 %s31, 1
      %p35 = scmp.eq.s32.totalorder %s23, 1
      %p36 = scmp.ne.s32.totalorder %s31, %s33
      %p37 = scmp.eq.s32.totalorder %s23, 0
      %p38 = por %p36, %p37
      %p39 = scmp.ne.s32.totalorder %s31, %s33
      %p40 = scmp.eq.s32.totalorder %s28, 1
      %p41 = por %p39, %p40
      %p42 = scmp.ne.s32.totalorder %s33, %s34
      %p43 = scmp.eq.s32.totalorder %s28, 0
      %p44 = por %p42, %p43
      %p45 = scmp.ne.s32.totalorder %s33, %s34
      %p46 = scmp.eq.s32.totalorder %s29, 1
      %p47 = por %p45, %p46
      %p49 = scmp.ne.s32.totalorder %s34, %s48
      %p50 = scmp.eq.s32.totalorder %s29, 0
      %p51 = por %p49, %p50
      %s53 = sadd.s32 %s52, 1
      %p56 = scmp.eq.s32.totalorder %s23, 1
      %p57 = scmp.ne.s32.totalorder %s52, %s54
      %p58 = scmp.eq.s32.totalorder %s23, 0
      %p59 = por %p57, %p58
      %p60 = scmp.ne.s32.totalorder %s52, %s54
      %p61 = scmp.eq.s32.totalorder %s28, 1
      %p62 = por %p60, %p61
      %p63 = scmp.ne.s32.totalorder %s54, %s55
      %p64 = scmp.eq.s32.totalorder %s28, 0
      %p65 = por %p63, %p64
      %p66 = scmp.ne.s32.totalorder %s54, %s55
      %p67 = scmp.eq.s32.totalorder %s29, 1
      %p68 = por %p66, %p67
      %p70 = scmp.ne.s32.totalorder %s55, %s69
      %p71 = scmp.eq.s32.totalorder %s29, 0
      %p72 = por %p70, %p71
      %s74 = sadd.s32 %s73, 1
      %p77 = scmp.eq.s32.totalorder %s23, 1
      %p78 = scmp.ne.s32.totalorder %s73, %s75
      %p79 = scmp.eq.s32.totalorder %s23, 0
      %p80 = por %p78, %p79
      %p81 = scmp.ne.s32.totalorder %s73, %s75
      %p82 = scmp.eq.s32.totalorder %s28, 1
      %p83 = por %p81, %p82
      %p84 = scmp.ne.s32.totalorder %s75, %s76
      %p85 = scmp.eq.s32.totalorder %s28, 0
      %p86 = por %p84, %p85
      %p87 = scmp.ne.s32.totalorder %s75, %s76
      %p88 = scmp.eq.s32.totalorder %s29, 1
      %p89 = por %p87, %p88
      %p91 = scmp.ne.s32.totalorder %s76, %s90
      %p92 = scmp.eq.s32.totalorder %s29, 0
      %p93 = por %p91, %p92
      %s95 = sadd.s32 %s94, 1
      %p98 = scmp.eq.s32.totalorder %s23, 1
      %p99 = scmp.ne.s32.totalorder %s94, %s96
      %p100 = scmp.eq.s32.totalorder %s23, 0
      %p101 = por %p99, %p100
      %p102 = scmp.ne.s32.totalorder %s94, %s96
      %p103 = scmp.eq.s32.totalorder %s28, 1
      %p104 = por %p102, %p103
      %p105 = scmp.ne.s32.totalorder %s96, %s97
      %p106 = scmp.eq.s32.totalorder %s28, 0
      %p107 = por %p105, %p106
      %p108 = scmp.ne.s32.totalorder %s96, %s97
      %p109 = scmp.eq.s32.totalorder %s29, 1
      %p110 = por %p108, %p109
      %p112 = scmp.ne.s32.totalorder %s97, %s111
      %p113 = scmp.eq.s32.totalorder %s29, 0
      %p114 = por %p112, %p113
      %s116 = sadd.s32 %s115, 1
      %p119 = scmp.eq.s32.totalorder %s23, 1
      %p120 = scmp.ne.s32.totalorder %s115, %s117
      %p121 = scmp.eq.s32.totalorder %s23, 0
      %p122 = por %p120, %p121
      %p123 = scmp.ne.s32.totalorder %s115, %s117
      %p124 = scmp.eq.s32.totalorder %s28, 1
      %p125 = por %p123, %p124
      %p126 = scmp.ne.s32.totalorder %s117, %s118
      %p127 = scmp.eq.s32.totalorder %s28, 0
      %p128 = por %p126, %p127
      %p129 = scmp.ne.s32.totalorder %s117, %s118
      %p130 = scmp.eq.s32.totalorder %s29, 1
      %p131 = por %p129, %p130
      %p133 = scmp.ne.s32.totalorder %s118, %s132
      %p134 = scmp.eq.s32.totalorder %s29, 0
      %p135 = por %p133, %p134
      %s136 = ssub.s32 %s23, %s30
      %p137 = scmp.eq.s32.totalorder %s136, 0
      %s139 = sadd.s32 %s138, 1
      %s140 = scalar_select %p137, %s138, %s139
      %p143 = pneg %p137
      %p144 = scmp.eq.s32.totalorder %s23, 1
      %p145 = por %p143, %p144
      %p146 = scmp.ne.s32.totalorder %s138, %s141
      %p147 = scmp.eq.s32.totalorder %s23, 0
      %p148 = por %p146, %p147
      %p149 = scmp.ne.s32.totalorder %s138, %s141
      %p150 = scmp.eq.s32.totalorder %s28, 1
      %p151 = por %p149, %p150
      %p152 = scmp.ne.s32.totalorder %s141, %s142
      %p153 = scmp.eq.s32.totalorder %s28, 0
      %p154 = por %p152, %p153
      %p155 = scmp.ne.s32.totalorder %s141, %s142
      %p156 = scmp.eq.s32.totalorder %s29, 1
      %p157 = por %p155, %p156
      %p159 = scmp.ne.s32.totalorder %s142, %s158
      %p160 = scmp.eq.s32.totalorder %s29, 0
      %p161 = por %p159, %p160
      %s162 = ssub.s32 %s23, %s30
      %p163 = scmp.eq.s32.totalorder %s162, 0
      %s165 = sadd.s32 %s164, 1
      %s166 = scalar_select %p163, %s164, %s165
      %p169 = pneg %p163
      %p170 = scmp.eq.s32.totalorder %s23, 1
      %p171 = por %p169, %p170
      %p172 = scmp.ne.s32.totalorder %s164, %s167
      %p173 = scmp.eq.s32.totalorder %s23, 0
      %p174 = por %p172, %p173
      %p175 = scmp.ne.s32.totalorder %s164, %s167
      %p176 = scmp.eq.s32.totalorder %s28, 1
      %p177 = por %p175, %p176
      %p178 = scmp.ne.s32.totalorder %s167, %s168
      %p179 = scmp.eq.s32.totalorder %s28, 0
      %p180 = por %p178, %p179
      %p181 = scmp.ne.s32.totalorder %s167, %s168
      %p182 = scmp.eq.s32.totalorder %s29, 1
      %p183 = por %p181, %p182
      %p185 = scmp.ne.s32.totalorder %s168, %s184
      %p186 = scmp.eq.s32.totalorder %s29, 0
      %p187 = por %p185, %p186
      %s188 = ssub.s32 %s23, %s30
      %p189 = scmp.eq.s32.totalorder %s188, 0
      %s191 = sadd.s32 %s190, 1
      %s192 = scalar_select %p189, %s190, %s191
      %p195 = pneg %p189
      %p196 = scmp.eq.s32.totalorder %s23, 1
      %p197 = por %p195, %p196
      %p198 = scmp.ne.s32.totalorder %s190, %s193
      %p199 = scmp.eq.s32.totalorder %s23, 0
      %p200 = por %p198, %p199
      %p201 = scmp.ne.s32.totalorder %s190, %s193
      %p202 = scmp.eq.s32.totalorder %s28, 1
      %p203 = por %p201, %p202
      %p204 = scmp.ne.s32.totalorder %s193, %s194
      %p205 = scmp.eq.s32.totalorder %s28, 0
      %p206 = por %p204, %p205
      %p207 = scmp.ne.s32.totalorder %s193, %s194
      %p208 = scmp.eq.s32.totalorder %s29, 1
      %p209 = por %p207, %p208
      %p211 = scmp.ne.s32.totalorder %s194, %s210
      %p212 = scmp.eq.s32.totalorder %s29, 0
      %p213 = por %p211, %p212
      %p214 = scmp.le.s32.totalorder 1, %s23
      %p215 = scmp.lt.s32.totalorder %s23, 3
      %p216 = pnand %p214, %p215
      %p217 = pneg %p216
      // Predicated region
      $region9: #{tpu_custom_call.1} parent=5 // pred_check
        _
      $region10: #{tpu_custom_call.1} parent=5 // pred_check_branch
        %219 = sbr.rel (%p216) target = $region12
      $region11: #{tpu_custom_call.1} parent=5 // pred_region
        %s220 = ssub.s32 %s23, 1
        // Predicated region
        $region13: #{tpu_custom_call.1} parent=11 // pred_check
          %p221 = pneg %p44
        $region14: #{tpu_custom_call.1} parent=11 // pred_check_branch
          %223 = sbr.rel (%p221) target = $region16
        $region15: #{tpu_custom_call.1} parent=11 // pred_region
          _
        $region16: #{tpu_custom_call.1} parent=11 // pred_fallthru
          _
        // Predicated region
        $region17: #{tpu_custom_call.1} parent=11 // pred_check
          %p224 = pneg %p65
        $region18: #{tpu_custom_call.1} parent=11 // pred_check_branch
          %226 = sbr.rel (%p224) target = $region20
        $region19: #{tpu_custom_call.1} parent=11 // pred_region
          _
        $region20: #{tpu_custom_call.1} parent=11 // pred_fallthru
          _
        // Predicated region
        $region21: #{tpu_custom_call.1} parent=11 // pred_check
          %p227 = pneg %p86
        $region22: #{tpu_custom_call.1} parent=11 // pred_check_branch
          %229 = sbr.rel (%p227) target = $region24
        $region23: #{tpu_custom_call.1} parent=11 // pred_region
          _
        $region24: #{tpu_custom_call.1} parent=11 // pred_fallthru
          _
        // Predicated region
        $region25: #{tpu_custom_call.1} parent=11 // pred_check
          %p230 = pneg %p107
        $region26: #{tpu_custom_call.1} parent=11 // pred_check_branch
          %232 = sbr.rel (%p230) target = $region28
        $region27: #{tpu_custom_call.1} parent=11 // pred_region
          _
        $region28: #{tpu_custom_call.1} parent=11 // pred_fallthru
          _
        // Predicated region
        $region29: #{tpu_custom_call.1} parent=11 // pred_check
          %p233 = pneg %p128
        $region30: #{tpu_custom_call.1} parent=11 // pred_check_branch
          %235 = sbr.rel (%p233) target = $region32
        $region31: #{tpu_custom_call.1} parent=11 // pred_region
          %237 = vsyncadd [#allocation4], 0
          %s238 = sshll.u32 %s4, 4
          %s239 = int_to_ptr.hbm [resolvable:$true] %s238
          %s240 = sshll.u32 [#allocation3], 4
          %s241 = int_to_ptr.vmem [resolvable:$true] %s240
          %246 = dma.hbm_to_vmem [thread:$0]  %s239, 8192, %s241, [#allocation4], 256, 256, 16
        $region32: #{tpu_custom_call.1} parent=11 // pred_fallthru
          _
      $region12: #{tpu_custom_call.1} parent=5 // pred_fallthru
        _
      %p247 = scmp.lt.s32.totalorder %s23, 2
      // Predicated region
      $region33: #{tpu_custom_call.1} parent=5 // pred_check
        %p248 = pneg %p247
      $region34: #{tpu_custom_call.1} parent=5 // pred_check_branch
        %250 = sbr.rel (%p248) target = $region36
      $region35: #{tpu_custom_call.1} parent=5 // pred_region
        // Predicated region
        $region37: #{tpu_custom_call.1} parent=35 // pred_check
          %p251 = pneg %p148
        $region38: #{tpu_custom_call.1} parent=35 // pred_check_branch
          %253 = sbr.rel (%p251) target = $region40
        $region39: #{tpu_custom_call.1} parent=35 // pred_region
          %p254 = scmp.lt.s32.totalorder %s23, 1
          %s255 = scalar_select %p254, %s23, 1
          %s256 = smul.addr %s255, 2
          %s257 = smul.addr %s256, 4
          %s258 = scalar_lea.vmem %s5, %s257
        $region40: #{tpu_custom_call.1} parent=35 // pred_fallthru
          _
      $region36: #{tpu_custom_call.1} parent=5 // pred_fallthru
        _
      %p259 = scmp.le.s32.totalorder 1, %s23
      %p260 = scmp.lt.s32.totalorder %s23, 3
      %p261 = pnand %p259, %p260
      %p262 = pneg %p261
      // Predicated region
      $region41: #{tpu_custom_call.1} parent=5 // pred_check
        _
      $region42: #{tpu_custom_call.1} parent=5 // pred_check_branch
        %264 = sbr.rel (%p261) target = $region44
      $region43: #{tpu_custom_call.1} parent=5 // pred_region
        %s265 = ssub.s32 %s23, 1
        // Predicated region
        $region45: #{tpu_custom_call.1} parent=43 // pred_check
          %p266 = pneg %p128
        $region46: #{tpu_custom_call.1} parent=43 // pred_check_branch
          %268 = sbr.rel (%p266) target = $region48
        $region47: #{tpu_custom_call.1} parent=43 // pred_region
          %270 = dma.done [#allocation4], 8192
        $region48: #{tpu_custom_call.1} parent=43 // pred_fallthru
          _
        %p271 = pneg %p44
        %p272 = pneg %p41
        %p273 = pneg %p65
        %p274 = pneg %p62
        %p275 = pneg %p86
        %p276 = pneg %p83
        %p277 = pneg %p107
        %p278 = pneg %p104
        %p279 = pneg %p128
        %p280 = pneg %p125
        %p281 = scmp.lt.s32.totalorder %s28, 1
        %s282 = scalar_select %p281, %s28, 1
        %s283 = smul.addr %s282, 2
        %s284 = smul.addr %s283, 4
        %s285 = scalar_lea.vmem %s5, %s284
        %p286 = pneg %p154
        %p287 = pneg %p151
        %p288 = pneg %p180
        %p289 = pneg %p177
        %s290 = sand.u32 %s167, 1
        %s291 = scalar_lea.sflag [#allocation5], %s290
        %s292 = sand.u32 %s167, 1
        %s293 = smul.addr %s292, 2
        %s294 = scalar_lea.vmem [#allocation6], %s293
        %p295 = pneg %p206
        %p296 = pneg %p203
        %s297 = sand.u32 %s193, 1
        %s298 = scalar_lea.sflag [#allocation8], %s297
        %s299 = sand.u32 %s193, 1
        %s300 = smul.addr %s299, 2
        %s301 = scalar_lea.vmem [#allocation7], %s300
        %p302 = scmp.lt.s32.totalorder %s28, 1
        %s303 = scalar_select %p302, %s28, 1
        %s304 = smul.addr %s303, 2
        %s305 = smul.addr %s304, 4
        %s306 = scalar_lea.vmem %s5, %s305
        %v307 = vld [vmem:[%s0] sm:$0x1]
        %v308 = vld [vmem:[#allocation2] sm:$0x1]
        %v309 = vld [vmem:[%s2] sm:$0xff]
        %v310 = vld [vmem:[%s2 + $0x8] sm:$0xff]
        %v311 = vld [vmem:[%s2 + $0x10] sm:$0xff]
        %v312 = vld [vmem:[%s2 + $0x18] sm:$0xff]
        %v313 = vld [vmem:[%s2 + $0x20] sm:$0xff]
        %v314 = vld [vmem:[%s2 + $0x28] sm:$0xff]
        %v315 = vld [vmem:[%s2 + $0x30] sm:$0xff]
        %v316 = vld [vmem:[%s2 + $0x38] sm:$0xff]
        %v317 = vld [vmem:[%s2 + $0x40] sm:$0xff]
        %v318 = vld [vmem:[%s2 + $0x48] sm:$0xff]
        %v319 = vld [vmem:[%s2 + $0x50] sm:$0xff]
        %v320 = vld [vmem:[%s2 + $0x58] sm:$0xff]
        %v321 = vld [vmem:[%s2 + $0x60] sm:$0xff]
        %v322 = vld [vmem:[%s2 + $0x68] sm:$0xff]
        %v323 = vld [vmem:[%s2 + $0x70] sm:$0xff]
        %v324 = vld [vmem:[%s2 + $0x78] sm:$0xff]
        %v325 = vld [vmem:[%s2 + $0x80] sm:$0xff]
        %v326 = vld [vmem:[%s2 + $0x88] sm:$0xff]
        %v327 = vld [vmem:[%s2 + $0x90] sm:$0xff]
        %v328 = vld [vmem:[%s2 + $0x98] sm:$0xff]
        %v329 = vld [vmem:[%s2 + $0xa0] sm:$0xff]
        %v330 = vld [vmem:[%s2 + $0xa8] sm:$0xff]
        %v331 = vld [vmem:[%s2 + $0xb0] sm:$0xff]
        %v332 = vld [vmem:[%s2 + $0xb8] sm:$0xff]
        %v333 = vld [vmem:[%s2 + $0xc0] sm:$0xff]
        %v334 = vld [vmem:[%s2 + $0xc8] sm:$0xff]
        %v335 = vld [vmem:[%s2 + $0xd0] sm:$0xff]
        %v336 = vld [vmem:[%s2 + $0xd8] sm:$0xff]
        %v337 = vld [vmem:[%s2 + $0xe0] sm:$0xff]
        %v338 = vld [vmem:[%s2 + $0xe8] sm:$0xff]
        %v339 = vld [vmem:[%s2 + $0xf0] sm:$0xff]
        %v340 = vld [vmem:[%s2 + $0xf8] sm:$0xff]
        %v341 = vld [vmem:[%s3] sm:$0xff]
        %v342 = vld [vmem:[%s3 + $0x8] sm:$0xff]
        %v343 = vld [vmem:[%s3 + $0x10] sm:$0xff]
        %v344 = vld [vmem:[%s3 + $0x18] sm:$0xff]
        %v345 = vld [vmem:[%s3 + $0x20] sm:$0xff]
        %v346 = vld [vmem:[%s3 + $0x28] sm:$0xff]
        %v347 = vld [vmem:[%s3 + $0x30] sm:$0xff]
        %v348 = vld [vmem:[%s3 + $0x38] sm:$0xff]
        %v349 = vld [vmem:[%s3 + $0x40] sm:$0xff]
        %v350 = vld [vmem:[%s3 + $0x48] sm:$0xff]
        %v351 = vld [vmem:[%s3 + $0x50] sm:$0xff]
        %v352 = vld [vmem:[%s3 + $0x58] sm:$0xff]
        %v353 = vld [vmem:[%s3 + $0x60] sm:$0xff]
        %v354 = vld [vmem:[%s3 + $0x68] sm:$0xff]
        %v355 = vld [vmem:[%s3 + $0x70] sm:$0xff]
        %v356 = vld [vmem:[%s3 + $0x78] sm:$0xff]
        %v357 = vld [vmem:[#allocation3] sm:$0xff]
        %v358 = vld [vmem:[#allocation3 + $0x8] sm:$0xff]
        %v359 = vld [vmem:[#allocation3 + $0x10] sm:$0xff]
        %v360 = vld [vmem:[#allocation3 + $0x18] sm:$0xff]
        %v361 = vld [vmem:[#allocation3 + $0x20] sm:$0xff]
        %v362 = vld [vmem:[#allocation3 + $0x28] sm:$0xff]
        %v363 = vld [vmem:[#allocation3 + $0x30] sm:$0xff]
        %v364 = vld [vmem:[#allocation3 + $0x38] sm:$0xff]
        %v365 = vld [vmem:[#allocation3 + $0x40] sm:$0xff]
        %v366 = vld [vmem:[#allocation3 + $0x48] sm:$0xff]
        %v367 = vld [vmem:[#allocation3 + $0x50] sm:$0xff]
        %v368 = vld [vmem:[#allocation3 + $0x58] sm:$0xff]
        %v369 = vld [vmem:[#allocation3 + $0x60] sm:$0xff]
        %v370 = vld [vmem:[#allocation3 + $0x68] sm:$0xff]
        %v371 = vld [vmem:[#allocation3 + $0x70] sm:$0xff]
        %v372 = vld [vmem:[#allocation3 + $0x78] sm:$0xff]
        %v373 = vld [vmem:[#allocation3 + $0x80] sm:$0xff]
        %v374 = vld [vmem:[#allocation3 + $0x88] sm:$0xff]
        %v375 = vld [vmem:[#allocation3 + $0x90] sm:$0xff]
        %v376 = vld [vmem:[#allocation3 + $0x98] sm:$0xff]
        %v377 = vld [vmem:[#allocation3 + $0xa0] sm:$0xff]
        %v378 = vld [vmem:[#allocation3 + $0xa8] sm:$0xff]
        %v379 = vld [vmem:[#allocation3 + $0xb0] sm:$0xff]
        %v380 = vld [vmem:[#allocation3 + $0xb8] sm:$0xff]
        %v381 = vld [vmem:[#allocation3 + $0xc0] sm:$0xff]
        %v382 = vld [vmem:[#allocation3 + $0xc8] sm:$0xff]
        %v383 = vld [vmem:[#allocation3 + $0xd0] sm:$0xff]
        %v384 = vld [vmem:[#allocation3 + $0xd8] sm:$0xff]
        %v385 = vld [vmem:[#allocation3 + $0xe0] sm:$0xff]
        %v386 = vld [vmem:[#allocation3 + $0xe8] sm:$0xff]
        %v387 = vld [vmem:[#allocation3 + $0xf0] sm:$0xff]
        %v388 = vld [vmem:[#allocation3 + $0xf8] sm:$0xff]
        %v389 = vld [vmem:[#allocation3 + $0x100] sm:$0xff]
        %v390 = vld [vmem:[#allocation3 + $0x108] sm:$0xff]
        %v391 = vld [vmem:[#allocation3 + $0x110] sm:$0xff]
        %v392 = vld [vmem:[#allocation3 + $0x118] sm:$0xff]
        %v393 = vld [vmem:[#allocation3 + $0x120] sm:$0xff]
        %v394 = vld [vmem:[#allocation3 + $0x128] sm:$0xff]
        %v395 = vld [vmem:[#allocation3 + $0x130] sm:$0xff]
        %v396 = vld [vmem:[#allocation3 + $0x138] sm:$0xff]
        %v397 = vld [vmem:[#allocation3 + $0x140] sm:$0xff]
        %v398 = vld [vmem:[#allocation3 + $0x148] sm:$0xff]
        %v399 = vld [vmem:[#allocation3 + $0x150] sm:$0xff]
        %v400 = vld [vmem:[#allocation3 + $0x158] sm:$0xff]
        %v401 = vld [vmem:[#allocation3 + $0x160] sm:$0xff]
        %v402 = vld [vmem:[#allocation3 + $0x168] sm:$0xff]
        %v403 = vld [vmem:[#allocation3 + $0x170] sm:$0xff]
        %v404 = vld [vmem:[#allocation3 + $0x178] sm:$0xff]
        %v405 = vld [vmem:[#allocation3 + $0x180] sm:$0xff]
        %v406 = vld [vmem:[#allocation3 + $0x188] sm:$0xff]
        %v407 = vld [vmem:[#allocation3 + $0x190] sm:$0xff]
        %v408 = vld [vmem:[#allocation3 + $0x198] sm:$0xff]
        %v409 = vld [vmem:[#allocation3 + $0x1a0] sm:$0xff]
        %v410 = vld [vmem:[#allocation3 + $0x1a8] sm:$0xff]
        %v411 = vld [vmem:[#allocation3 + $0x1b0] sm:$0xff]
        %v412 = vld [vmem:[#allocation3 + $0x1b8] sm:$0xff]
        %v413 = vld [vmem:[#allocation3 + $0x1c0] sm:$0xff]
        %v414 = vld [vmem:[#allocation3 + $0x1c8] sm:$0xff]
        %v415 = vld [vmem:[#allocation3 + $0x1d0] sm:$0xff]
        %v416 = vld [vmem:[#allocation3 + $0x1d8] sm:$0xff]
        %v417 = vld [vmem:[#allocation3 + $0x1e0] sm:$0xff]
        %v418 = vld [vmem:[#allocation3 + $0x1e8] sm:$0xff]
        %v419 = vld [vmem:[#allocation3 + $0x1f0] sm:$0xff]
        %v420 = vld [vmem:[#allocation3 + $0x1f8] sm:$0xff]
        %v421 = vld [vmem:[%s306] sm:$0xff]
        %423 = vst [vmem:[#allocation1] ss:$2 sm:$0xff] %v421
        %v424 = vld.sshfl [vmem:[#allocation1] sm:$0xff pattern:$0x75316420]
        %v425 = vld.sshfl [vmem:[#allocation1 + $0x8] sm:$0xff pattern:$0x75316420]
        %vm426 = vcmask 31744
        %v428 = vsel %vm426, %v307, 0
        %vm430 = vcmask 1043456
        %v431 = vsel %vm430, %v424, 0
        %v433 = vsel %vm430, %v425, 0
        %435 = vmatpush.msra.mxu0 0.0
        %436 = vmatpush.msra.mxu0 0.0
        %437 = vmatpush.msra.mxu0 0.0
        %438 = vmatpush.msra.mxu0 0.0
        %439 = vmatpush.msra.mxu0 0.0
        %440 = vmatpush.msra.mxu0 0.0
        %441 = vmatpush.msra.mxu0 0.0
        %442 = vmatpush.msra.mxu0 0.0
        %443 = vmatpush.msra.mxu0 0.0
        %444 = vmatpush.msra.mxu0 0.0
        %445 = vmatpush.msra.mxu0 0.0
        %446 = vmatpush.msra.mxu0 0.0
        %447 = vmatpush.msra.mxu0 0.0
        %448 = vmatpush.msra.mxu0 0.0
        %449 = vmatpush.msra.mxu0 0.0
        %450 = vmatpush.msra.mxu0 %v431
        %451 = vmatmul.f32.gmra.mxu0 %v428
        %v452 = vpop.f32.mrf.mxu0
        %v453 = vadd.f32 0.0, %v452
        %454 = vdwg.mxu0
        %455 = vmatpush.msra.mxu0 0.0
        %456 = vmatpush.msra.mxu0 0.0
        %457 = vmatpush.msra.mxu0 0.0
        %458 = vmatpush.msra.mxu0 0.0
        %459 = vmatpush.msra.mxu0 0.0
        %460 = vmatpush.msra.mxu0 0.0
        %461 = vmatpush.msra.mxu0 0.0
        %462 = vmatpush.msra.mxu0 0.0
        %463 = vmatpush.msra.mxu0 0.0
        %464 = vmatpush.msra.mxu0 0.0
        %465 = vmatpush.msra.mxu0 0.0
        %466 = vmatpush.msra.mxu0 0.0
        %467 = vmatpush.msra.mxu0 0.0
        %468 = vmatpush.msra.mxu0 0.0
        %469 = vmatpush.msra.mxu0 0.0
        %470 = vmatpush.msra.mxu0 %v433
        %471 = vmatmul.f32.gmra.mxu0 %v428
        %v472 = vpop.f32.mrf.mxu0
        %v473 = vadd.f32 0.0, %v472
        %474 = vdwg.mxu0
        %476 = vset.pattern.permute.xlu0 0
        %477 = vperm.xlu0 %476, %v308
        %v478 = vpop.permute.xlu0 %477
        %v480 = vperm.slane %v478, 0
        %481 = vmatpush.msra.mxu0 %v324
        %482 = vmatpush.msra.mxu0 %v323
        %483 = vmatpush.msra.mxu0 %v322
        %484 = vmatpush.msra.mxu0 %v321
        %485 = vmatpush.msra.mxu0 %v320
        %486 = vmatpush.msra.mxu0 %v319
        %487 = vmatpush.msra.mxu0 %v318
        %488 = vmatpush.msra.mxu0 %v317
        %489 = vmatpush.msra.mxu0 %v316
        %490 = vmatpush.msra.mxu0 %v315
        %491 = vmatpush.msra.mxu0 %v314
        %492 = vmatpush.msra.mxu0 %v313
        %493 = vmatpush.msra.mxu0 %v312
        %494 = vmatpush.msra.mxu0 %v311
        %495 = vmatpush.msra.mxu0 %v310
        %496 = vmatpush.msra.mxu0 %v309
        %497 = vmatmul.f32.gmra.mxu0 %v453
        %v498 = vpop.f32.mrf.mxu0
        %v499 = vadd.f32 %v480, %v498
        %500 = vdwg.mxu0
        %501 = vmatpush.msra.mxu0 %v340
        %502 = vmatpush.msra.mxu0 %v339
        %503 = vmatpush.msra.mxu0 %v338
        %504 = vmatpush.msra.mxu0 %v337
        %505 = vmatpush.msra.mxu0 %v336
        %506 = vmatpush.msra.mxu0 %v335
        %507 = vmatpush.msra.mxu0 %v334
        %508 = vmatpush.msra.mxu0 %v333
        %509 = vmatpush.msra.mxu0 %v332
        %510 = vmatpush.msra.mxu0 %v331
        %511 = vmatpush.msra.mxu0 %v330
        %512 = vmatpush.msra.mxu0 %v329
        %513 = vmatpush.msra.mxu0 %v328
        %514 = vmatpush.msra.mxu0 %v327
        %515 = vmatpush.msra.mxu0 %v326
        %516 = vmatpush.msra.mxu0 %v325
        %517 = vmatmul.f32.gmra.mxu0 %v473
        %v518 = vpop.f32.mrf.mxu0
        %v519 = vadd.f32 %v499, %v518
        %520 = vdwg.mxu0
        %vm521 = vcmp.ge.f32.partialorder %v519, 0.0
        %v522 = vsel %vm521, 1, 0
        %v523 = vcvt.s32.f32 %v522
        %vm524 = vcmask 523264
        %v526 = vsel %vm524, %v523, 0
        %528 = vmatpush.msra.mxu0 0.0
        %529 = vmatpush.msra.mxu0 0.0
        %530 = vmatpush.msra.mxu0 0.0
        %531 = vmatpush.msra.mxu0 0.0
        %532 = vmatpush.msra.mxu0 0.0
        %533 = vmatpush.msra.mxu0 0.0
        %534 = vmatpush.msra.mxu0 0.0
        %535 = vmatpush.msra.mxu0 0.0
        %536 = vmatpush.msra.mxu0 %v355
        %537 = vmatpush.msra.mxu0 %v353
        %538 = vmatpush.msra.mxu0 %v351
        %539 = vmatpush.msra.mxu0 %v349
        %540 = vmatpush.msra.mxu0 %v347
        %541 = vmatpush.msra.mxu0 %v345
        %542 = vmatpush.msra.mxu0 %v343
        %543 = vmatpush.msra.mxu0 %v341
        %544 = vmatmul.f32.gmra.mxu0 %v526
        %v545 = vpop.f32.mrf.mxu0
        %v546 = vadd.f32 0.0, %v545
        %547 = vdwg.mxu0
        %548 = vmatpush.msra.mxu0 0.0
        %549 = vmatpush.msra.mxu0 0.0
        %550 = vmatpush.msra.mxu0 0.0
        %551 = vmatpush.msra.mxu0 0.0
        %552 = vmatpush.msra.mxu0 0.0
        %553 = vmatpush.msra.mxu0 0.0
        %554 = vmatpush.msra.mxu0 0.0
        %555 = vmatpush.msra.mxu0 0.0
        %556 = vmatpush.msra.mxu0 %v356
        %557 = vmatpush.msra.mxu0 %v354
        %558 = vmatpush.msra.mxu0 %v352
        %559 = vmatpush.msra.mxu0 %v350
        %560 = vmatpush.msra.mxu0 %v348
        %561 = vmatpush.msra.mxu0 %v346
        %562 = vmatpush.msra.mxu0 %v344
        %563 = vmatpush.msra.mxu0 %v342
        %564 = vmatmul.f32.gmra.mxu0 %v526
        %v565 = vpop.f32.mrf.mxu0
        %v566 = vadd.f32 0.0, %v565
        %567 = vdwg.mxu0
        %v570 = vrot.slane %v566, 7
        %vm571 = vcmask 1040384
        %v572 = vsel %vm571, %v546, %v570
        %v574 = vlaneseq
        %vm575 = vcmp.ge.s32.totalorder %v574, 0
        %vm576 = vcmp.lt.s32.totalorder %v574, 256
        %vm577 = vmand %vm575, %vm576
        %578 = vst.msk [vmem:[%s294] sm:$0x3] %vm577, %v572
        %579 = vmatpush.msra.mxu0 %v387
        %580 = vmatpush.msra.mxu0 %v385
        %581 = vmatpush.msra.mxu0 %v383
        %582 = vmatpush.msra.mxu0 %v381
        %583 = vmatpush.msra.mxu0 %v379
        %584 = vmatpush.msra.mxu0 %v377
        %585 = vmatpush.msra.mxu0 %v375
        %586 = vmatpush.msra.mxu0 %v373
        %587 = vmatpush.msra.mxu0 %v371
        %588 = vmatpush.msra.mxu0 %v369
        %589 = vmatpush.msra.mxu0 %v367
        %590 = vmatpush.msra.mxu0 %v365
        %591 = vmatpush.msra.mxu0 %v363
        %592 = vmatpush.msra.mxu0 %v361
        %593 = vmatpush.msra.mxu0 %v359
        %594 = vmatpush.msra.mxu0 %v357
        %595 = vmatmul.f32.gmra.mxu0 %v546
        %v596 = vpop.f32.mrf.mxu0
        %v597 = vadd.f32 0.0, %v596
        %598 = vdwg.mxu0
        %599 = vmatpush.msra.mxu0 %v419
        %600 = vmatpush.msra.mxu0 %v417
        %601 = vmatpush.msra.mxu0 %v415
        %602 = vmatpush.msra.mxu0 %v413
        %603 = vmatpush.msra.mxu0 %v411
        %604 = vmatpush.msra.mxu0 %v409
        %605 = vmatpush.msra.mxu0 %v407
        %606 = vmatpush.msra.mxu0 %v405
        %607 = vmatpush.msra.mxu0 %v403
        %608 = vmatpush.msra.mxu0 %v401
        %609 = vmatpush.msra.mxu0 %v399
        %610 = vmatpush.msra.mxu0 %v397
        %611 = vmatpush.msra.mxu0 %v395
        %612 = vmatpush.msra.mxu0 %v393
        %613 = vmatpush.msra.mxu0 %v391
        %614 = vmatpush.msra.mxu0 %v389
        %615 = vmatmul.f32.gmra.mxu0 %v566
        %v616 = vpop.f32.mrf.mxu0
        %v617 = vadd.f32 %v597, %v616
        %618 = vdwg.mxu0
        %619 = vmatpush.msra.mxu0 %v388
        %620 = vmatpush.msra.mxu0 %v386
        %621 = vmatpush.msra.mxu0 %v384
        %622 = vmatpush.msra.mxu0 %v382
        %623 = vmatpush.msra.mxu0 %v380
        %624 = vmatpush.msra.mxu0 %v378
        %625 = vmatpush.msra.mxu0 %v376
        %626 = vmatpush.msra.mxu0 %v374
        %627 = vmatpush.msra.mxu0 %v372
        %628 = vmatpush.msra.mxu0 %v370
        %629 = vmatpush.msra.mxu0 %v368
        %630 = vmatpush.msra.mxu0 %v366
        %631 = vmatpush.msra.mxu0 %v364
        %632 = vmatpush.msra.mxu0 %v362
        %633 = vmatpush.msra.mxu0 %v360
        %634 = vmatpush.msra.mxu0 %v358
        %635 = vmatmul.f32.gmra.mxu0 %v546
        %v636 = vpop.f32.mrf.mxu0
        %v637 = vadd.f32 0.0, %v636
        %638 = vdwg.mxu0
        %639 = vmatpush.msra.mxu0 %v420
        %640 = vmatpush.msra.mxu0 %v418
        %641 = vmatpush.msra.mxu0 %v416
        %642 = vmatpush.msra.mxu0 %v414
        %643 = vmatpush.msra.mxu0 %v412
        %644 = vmatpush.msra.mxu0 %v410
        %645 = vmatpush.msra.mxu0 %v408
        %646 = vmatpush.msra.mxu0 %v406
        %647 = vmatpush.msra.mxu0 %v404
        %648 = vmatpush.msra.mxu0 %v402
        %649 = vmatpush.msra.mxu0 %v400
        %650 = vmatpush.msra.mxu0 %v398
        %651 = vmatpush.msra.mxu0 %v396
        %652 = vmatpush.msra.mxu0 %v394
        %653 = vmatpush.msra.mxu0 %v392
        %654 = vmatpush.msra.mxu0 %v390
        %655 = vmatmul.f32.gmra.mxu0 %v566
        %v656 = vpop.f32.mrf.mxu0
        %v657 = vadd.f32 %v637, %v656
        %658 = vdwg.mxu0
        %vm659 = vcmp.gt.f32.partialorder %v617, 0.5
        %vm660 = vcmp.gt.f32.partialorder %v657, 0.5
        %v661 = vsel %vm659, 1, 0
        %v662 = vsel %vm660, 1, 0
        %v663 = vcvt.s32.f32 %v661
        %v664 = vcvt.s32.f32 %v662
        %v667 = vrot.slane %v664, 7
        %v668 = vsel %vm571, %v663, %v667
        %670 = vst.msk [vmem:[%s301] sm:$0x3] %vm577, %v668
        %s671 = sand.u32 %s167, 1
        %s672 = scalar_lea.sflag [#allocation5], %s671
        %s673 = sand.u32 %s167, 1
        %s674 = smul.addr %s673, 2
        %s675 = scalar_lea.vmem [#allocation6], %s674
        %s676 = sand.u32 %s193, 1
        %s677 = scalar_lea.sflag [#allocation8], %s676
        %s678 = sand.u32 %s193, 1
        %s679 = smul.addr %s678, 2
        %s680 = scalar_lea.vmem [#allocation7], %s679
        // Predicated region
        $region49: #{tpu_custom_call.1} parent=43 // pred_check
          %p681 = pneg %p177
        $region50: #{tpu_custom_call.1} parent=43 // pred_check_branch
          %683 = sbr.rel (%p681) target = $region52
        $region51: #{tpu_custom_call.1} parent=43 // pred_region
          %685 = vsyncadd %s672, 0
          %s686 = smul.addr %s28, 2
          %s687 = scalar_lea.hbm %s6, %s686
          %s689 = sshll.u32 %s675, 4
          %s690 = int_to_ptr.vmem [resolvable:$true] %s689
          %s691 = sshll.u32 %s687, 4
          %s692 = int_to_ptr.hbm [resolvable:$true] %s691
          %694 = dma.vmem_to_hbm [thread:$0]  %s690, 32, %s692, %s672
        $region52: #{tpu_custom_call.1} parent=43 // pred_fallthru
          _
        // Predicated region
        $region53: #{tpu_custom_call.1} parent=43 // pred_check
          %p695 = pneg %p203
        $region54: #{tpu_custom_call.1} parent=43 // pred_check_branch
          %697 = sbr.rel (%p695) target = $region56
        $region55: #{tpu_custom_call.1} parent=43 // pred_region
          %699 = vsyncadd %s677, 0
          %s700 = smul.addr %s28, 2
          %s701 = scalar_lea.hbm %s7, %s700
          %s703 = sshll.u32 %s680, 4
          %s704 = int_to_ptr.vmem [resolvable:$true] %s703
          %s705 = sshll.u32 %s701, 4
          %s706 = int_to_ptr.hbm [resolvable:$true] %s705
          %708 = dma.vmem_to_hbm [thread:$0]  %s704, 32, %s706, %s677
        $region56: #{tpu_custom_call.1} parent=43 // pred_fallthru
          _
      $region44: #{tpu_custom_call.1} parent=5 // pred_fallthru
        _
      %p709 = scmp.le.s32.totalorder 2, %s23
      // Predicated region
      $region57: #{tpu_custom_call.1} parent=5 // pred_check
        %p710 = pneg %p709
      $region58: #{tpu_custom_call.1} parent=5 // pred_check_branch
        %712 = sbr.rel (%p710) target = $region60
      $region59: #{tpu_custom_call.1} parent=5 // pred_region
        %s713 = ssub.s32 %s23, 2
        // Predicated region
        $region61: #{tpu_custom_call.1} parent=59 // pred_check
          %p714 = pneg %p183
        $region62: #{tpu_custom_call.1} parent=59 // pred_check_branch
          %716 = sbr.rel (%p714) target = $region64
        $region63: #{tpu_custom_call.1} parent=59 // pred_region
          %s717 = sand.u32 %s168, 1
          %s718 = scalar_lea.sflag [#allocation5], %s717
          %s719 = sand.u32 %s168, 1
          %s720 = smul.addr %s719, 2
          %s721 = scalar_lea.vmem [#allocation6], %s720
          %723 = dma.done %s718, 32
        $region64: #{tpu_custom_call.1} parent=59 // pred_fallthru
          _
        // Predicated region
        $region65: #{tpu_custom_call.1} parent=59 // pred_check
          %p724 = pneg %p209
        $region66: #{tpu_custom_call.1} parent=59 // pred_check_branch
          %726 = sbr.rel (%p724) target = $region68
        $region67: #{tpu_custom_call.1} parent=59 // pred_region
          %s727 = sand.u32 %s194, 1
          %s728 = scalar_lea.sflag [#allocation8], %s727
          %s729 = sand.u32 %s194, 1
          %s730 = smul.addr %s729, 2
          %s731 = scalar_lea.vmem [#allocation7], %s730
          %733 = dma.done %s728, 32
        $region68: #{tpu_custom_call.1} parent=59 // pred_fallthru
          _
      $region60: #{tpu_custom_call.1} parent=5 // pred_fallthru
        _
    $region6: #{tpu_custom_call.1} parent=1 // loop_footer
      %s27 = sadd.s32 1, %s23
    $region7: #{tpu_custom_call.1} parent=1 // loop_footer_branch
      %22 = sbr.rel target = $region3
    $region8: #{tpu_custom_call.1} parent=1 // loop_exit
      _
    %734 = vsyncpa [#allocation4], 1
    %s735 = scalar_lea.sflag [#allocation4], 1
    %736 = vsyncpa %s735, 1
    %737 = vsyncpa [#allocation5], 1
    %s738 = scalar_lea.sflag [#allocation5], 1
    %739 = vsyncpa %s738, 1
    %740 = vsyncpa [#allocation8], 1
    %s741 = scalar_lea.sflag [#allocation8], 1
    %742 = vsyncpa %s741, 1

</llo_original>
